<compile_context>
chip_gen: v5e
topology: v5e:2x2
jax: 0.10.0
libtpu: 0.0.40
codegen_flags: <defaults>
</compile_context>

<pallas_src>
import functools

import jax
import jax.numpy as jnp
from jax.experimental import pallas as pl
from jax.experimental.pallas import tpu as pltpu


def _masked_sq_kernel(chunk_min_ref,      # (NR,) int32, SMEM (scalar prefetch)
                      lens_ref,           # (tR, 1) int32 per-row valid lengths
                      pred_ref, tgt_ref,  # (tR, tT) input tiles (any float dtype)
                      acc_ref):           # (8, tT) f32 resident partial-sum block
    i = pl.program_id(0)                  # row-chunk         (parallel)
    jo = pl.program_id(1)                 # outer time chunk  (parallel, v7x megacore)
    ji = pl.program_id(2)                 # inner time tile   (arbitrary / reduction)
    nti = pl.num_programs(2)

    tR, tT = pred_ref.shape
    j = jo * nti + ji                     # logical time-tile index
    t0 = j * tT                           # global time offset of this tile

    @pl.when(ji == 0)
    def _init():
        acc_ref[...] = jnp.zeros_like(acc_ref)

    p = pred_ref[...].astype(jnp.float32)
    q = tgt_ref[...].astype(jnp.float32)

    def _accum(sq):
        # (tR, tT) -> (tR//8, 8, tT) is an 8-row-group split of the sublane
        # axis (layout-preserving); reduce sublane-groups with pure VPU adds.
        if tR == 8:
            acc_ref[...] += sq
        else:
            acc_ref[...] += jnp.sum(sq.reshape(tR // 8, 8, tT), axis=0)

    # Fast path: every row of this chunk is valid through the end of the tile
    # (and the tile lies entirely inside real data), so no cmp+select needed.
    fully_valid = (t0 + tT) <= chunk_min_ref[i]

    @pl.when(fully_valid)
    def _fast():
        d = p - q
        _accum(d * d)

    @pl.when(jnp.logical_not(fully_valid))
    def _slow():
        lens = lens_ref[...]                                      # (tR, 1) int32
        # iota < (lens - t0): the full-tile index add becomes a (tR,1) subtract.
        rel = jax.lax.broadcasted_iota(jnp.int32, (tR, tT), 1) < (lens - t0)
        # Mask BEFORE squaring: undefined ragged-tail / padded-row data
        # (possibly Inf/NaN) can never reach the accumulator.
        d = jnp.where(rel, p - q, 0.0)
        _accum(d * d)


def _select_tiling():
    """Generation-aware tile table: (tile_rows, tile_lanes, vmem_limit_bytes)."""
    try:
        kind = jax.devices()[0].device_kind.lower()
    except Exception:  # pragma: no cover - conservative fallback
        kind = ""
    if "v7" in kind or "7x" in kind:
        # ~8 MiB f32 tiles: per-step DMA >> fixed per-step overhead at 3.2 TB/s.
        # 2 inputs x 2 buffers = 32 MiB -> explicit 48 MiB scoped limit
        # (v7x has only 64 MiB physical VMEM; scoped default is 32 MiB).
        return 512, 4096, 48 << 20
    # v5e / v6e / unknown: 2 MiB tiles (8 MiB double-buffered) stay inside
    # v5e's 16 MiB scoped-VMEM default and already sit near roofline on v6e.
    return 256, 2048, None


@functools.partial(jax.jit, static_argnames=("weight",))
def hypa_assessment(pred, tgt, lengths, *, weight=1.0):
    """Masked MSE ('mean' reduction) * weight, as in HypaAssessment.forward."""
    # --- LengthHarmonizer (glue): truncate harmonized inputs to common length.
    t_min = min(pred.shape[-1], tgt.shape[-1])
    pred = pred[..., :t_min]
    tgt = tgt[..., :t_min]

    B, C, T = pred.shape
    lengths = jnp.minimum(lengths.astype(jnp.int32), T)

    # Lane-dense row slab: (B*C, T).  Each row inherits its batch's length
    # (the torch mask has channel dim 1 and is applied by broadcast).
    R = B * C
    pred2 = pred.reshape(R, T)
    tgt2 = tgt.reshape(R, T)
    row_lens = jnp.repeat(lengths, C)                     # (R,)

    LANE, SUB = 128, 8
    tile_rows, tile_lanes, vmem_limit = _select_tiling()
    tT = min(-(-T // LANE) * LANE, tile_lanes)
    tR = min(-(-R // SUB) * SUB, tile_rows)
    assert tR % SUB == 0 and tT % LANE == 0               # (8,128) tile constraint

    NR = -(-R // tR)
    NT = -(-T // tT)

    # v7x megacore: when the (parallel) row axis has a single program, split
    # time into an outer parallel chunk so the second TensorCore gets half
    # the stream.  Neutral on single-core v5e/v6e.
    NTO = 2 if (NR == 1 and NT >= 4) else 1
    NTI = -(-NT // NTO)
    clamp = (NTO * NTI) > NT          # at most one phantom step; masked to 0 in-kernel

    def time_block(jo, ji):
        tb = jo * NTI + ji
        return jnp.minimum(tb, NT - 1) if clamp else tb

    # Only the tiny 1-D length vector is padded (padded rows -> length 0).
    # The big input slabs are streamed unpadded: no extra HBM round trip.
    R_pad = NR * tR
    row_lens_pad = jnp.pad(row_lens, (0, R_pad - R))
    lens2 = row_lens_pad.reshape(R_pad, 1)
    chunk_min = row_lens_pad.reshape(NR, tR).min(axis=1).astype(jnp.int32)

    grid_spec = pltpu.PrefetchScalarGridSpec(
        num_scalar_prefetch=1,        # chunk_min -> SMEM; drives the fast path
        grid=(NR, NTO, NTI),
        in_specs=[
            pl.BlockSpec((tR, 1), lambda i, jo, ji, cm: (i, 0)),            # lens
            pl.BlockSpec((tR, tT), lambda i, jo, ji, cm: (i, time_block(jo, ji))),
            pl.BlockSpec((tR, tT), lambda i, jo, ji, cm: (i, time_block(jo, ji))),
        ],
        # One vreg-shaped (8, tT) partial-sum block per (row-chunk, time-chunk);
        # resident across the (arbitrary) inner time axis.
        out_specs=pl.BlockSpec((None, None, SUB, tT),
                               lambda i, jo, ji, cm: (i, jo, 0, 0)),
    )

    partials = pl.pallas_call(
        _masked_sq_kernel,
        grid_spec=grid_spec,
        out_shape=jax.ShapeDtypeStruct((NR, NTO, SUB, tT), jnp.float32),
        compiler_params=pltpu.CompilerParams(
            dimension_semantics=("parallel", "parallel", "arbitrary"),
            vmem_limit_bytes=vmem_limit,
        ),
    )(chunk_min, lens2, pred2, tgt2)

    sq_sum = jnp.sum(partials)                            # single final reduce

    # MaskedAssessment 'mean': normalize = prod(shape[1:-1]) = C;
    # mask.flatten().sum() == sum(min(len_b, T)) (mask channel dim is 1).
    # NOTE: like the PyTorch reference, this divides by zero if all lengths==0.
    mask_count = jnp.sum(lengths).astype(jnp.float32)
    return (sq_sum / (float(C) * mask_count)) * weight


def _reference(pred, tgt, lengths, weight):
    B, C, T = pred.shape
    t_idx = jnp.arange(T)[None, None, :]
    mask = (t_idx < lengths[:, None, None]).astype(jnp.float32)   # (B, 1, T)
    p = pred * mask
    q = tgt * mask
    sum_sq = jnp.sum((p - q) ** 2)
    return weight * sum_sq / (C * jnp.sum(mask))


if __name__ == "__main__":
    B, C, T = 2, 4, 128
    weight = 0.5

    key = jax.random.PRNGKey(0)
    k1, k2 = jax.random.split(key)
    pred = jax.random.normal(k1, (B, C, T), dtype=jnp.float32)
    tgt = jax.random.normal(k2, (B, C, T), dtype=jnp.float32)
    lengths = jnp.array([100, 128], dtype=jnp.int32)

    out = hypa_assessment(pred, tgt, lengths, weight=weight)
    out = jax.block_until_ready(out)

    ref = _reference(pred, tgt, lengths, weight)
    assert jnp.allclose(out, ref, rtol=1e-5, atol=1e-5), (out, ref)

    print("KERNEL_OK")
</pallas_src>

<mosaic_0001>
module attributes {stable_mosaic.version = 11 : i64} {
  func.func @_masked_sq_kernel(%arg0: i32, %arg1: i32, %arg2: i32, %arg3: memref<1xi32, #tpu.memory_space<smem>>, %arg4: memref<8x1xi32, #tpu.memory_space<vmem>>, %arg5: memref<8x128xf32, #tpu.memory_space<vmem>>, %arg6: memref<8x128xf32, #tpu.memory_space<vmem>>, %arg7: memref<1x1x8x128xf32, #tpu.memory_space<vmem>>) attributes {dimension_semantics = [#tpu.dimension_semantics<parallel>, #tpu.dimension_semantics<parallel>, #tpu.dimension_semantics<arbitrary>], iteration_bounds = array<i64: 1, 1, 1>, scalar_prefetch = 1 : i64, scratch_operands = 0 : i64, tpu.core_type = #tpu.core_type<tc>, window_params = [{transform_indices = @transform_0, window_bounds = array<i64: 8, 1>}, {transform_indices = @transform_1, window_bounds = array<i64: 8, 128>}, {transform_indices = @transform_2, window_bounds = array<i64: 8, 128>}, {transform_indices = @transform_3, window_bounds = array<i64: 1, 1, 8, 128>}]} {
    %c1_i32 = arith.constant 1 : i32
    %0 = arith.muli %arg1, %c1_i32 : i32
    %1 = arith.addi %0, %arg2 : i32
    %c128_i32 = arith.constant 128 : i32
    %2 = arith.muli %1, %c128_i32 : i32
    %c0_i32 = arith.constant 0 : i32
    %3 = arith.cmpi eq, %arg2, %c0_i32 : i32
    %4 = arith.extui %3 : i1 to i32
    %c0_i32_0 = arith.constant 0 : i32
    %5 = arith.cmpi ne, %4, %c0_i32_0 : i32
    scf.if %5 {
      %cst = arith.constant 0.000000e+00 : f32
      %17 = vector.broadcast %cst : f32 to vector<8x128xf32>
      %c0_7 = arith.constant 0 : index
      %c0_8 = arith.constant 0 : index
      %c0_9 = arith.constant 0 : index
      %c0_10 = arith.constant 0 : index
      %18 = vector.load %arg7[%c0_7, %c0_8, %c0_9, %c0_10] : memref<1x1x8x128xf32, #tpu.memory_space<vmem>>, vector<1x1x8x128xf32>
      %19 = vector.shape_cast %18 : vector<1x1x8x128xf32> to vector<8x128xf32>
      %20 = vector.shape_cast %17 : vector<8x128xf32> to vector<1x1x8x128xf32>
      tpu.vector_store %arg7[%c0_7, %c0_8, %c0_9, %c0_10], %20 {strides = array<i32>} : memref<1x1x8x128xf32, #tpu.memory_space<vmem>>, vector<1x1x8x128xf32>,
    } else {
    }
    %c0 = arith.constant 0 : index
    %c0_1 = arith.constant 0 : index
    %6 = vector.load %arg5[%c0, %c0_1] : memref<8x128xf32, #tpu.memory_space<vmem>>, vector<8x128xf32>
    %c0_2 = arith.constant 0 : index
    %c0_3 = arith.constant 0 : index
    %7 = vector.load %arg6[%c0_2, %c0_3] : memref<8x128xf32, #tpu.memory_space<vmem>>, vector<8x128xf32>
    %c128_i32_4 = arith.constant 128 : i32
    %8 = arith.addi %2, %c128_i32_4 : i32
    %9 = arith.index_cast %arg0 : i32 to index
    %10 = memref.load %arg3[%9] : memref<1xi32, #tpu.memory_space<smem>>
    %11 = arith.cmpi sle, %8, %10 : i32
    %12 = arith.extui %11 : i1 to i32
    %c0_i32_5 = arith.constant 0 : i32
    %13 = arith.cmpi ne, %12, %c0_i32_5 : i32
    scf.if %13 {
      %17 = arith.subf %6, %7 : vector<8x128xf32>
      %18 = arith.mulf %17, %17 : vector<8x128xf32>
      %c0_7 = arith.constant 0 : index
      %c0_8 = arith.constant 0 : index
      %c0_9 = arith.constant 0 : index
      %c0_10 = arith.constant 0 : index
      %19 = vector.load %arg7[%c0_7, %c0_8, %c0_9, %c0_10] : memref<1x1x8x128xf32, #tpu.memory_space<vmem>>, vector<1x1x8x128xf32>
      %20 = vector.shape_cast %19 : vector<1x1x8x128xf32> to vector<8x128xf32>
      %21 = arith.addf %20, %18 : vector<8x128xf32>
      %c0_11 = arith.constant 0 : index
      %c0_12 = arith.constant 0 : index
      %c0_13 = arith.constant 0 : index
      %c0_14 = arith.constant 0 : index
      %22 = vector.load %arg7[%c0_11, %c0_12, %c0_13, %c0_14] : memref<1x1x8x128xf32, #tpu.memory_space<vmem>>, vector<1x1x8x128xf32>
      %23 = vector.shape_cast %22 : vector<1x1x8x128xf32> to vector<8x128xf32>
      %24 = vector.shape_cast %21 : vector<8x128xf32> to vector<1x1x8x128xf32>
      tpu.vector_store %arg7[%c0_11, %c0_12, %c0_13, %c0_14], %24 {strides = array<i32>} : memref<1x1x8x128xf32, #tpu.memory_space<vmem>>, vector<1x1x8x128xf32>,
    } else {
    }
    %true = arith.constant true
    %14 = arith.xori %11, %true : i1
    %15 = arith.extui %14 : i1 to i32
    %c0_i32_6 = arith.constant 0 : i32
    %16 = arith.cmpi ne, %15, %c0_i32_6 : i32
    scf.if %16 {
      %c0_7 = arith.constant 0 : index
      %c0_8 = arith.constant 0 : index
      %17 = vector.load %arg4[%c0_7, %c0_8] : memref<8x1xi32, #tpu.memory_space<vmem>>, vector<8x1xi32>
      %18 = tpu.iota {dimensions = array<i32: 1>} : vector<8x128xi32>
      %19 = vector.broadcast %2 : i32 to vector<8x1xi32>
      %20 = arith.subi %17, %19 : vector<8x1xi32>
      %21 = vector.broadcast %20 : vector<8x1xi32> to vector<8x128xi32>
      %22 = arith.cmpi slt, %18, %21 : vector<8x128xi32>
      %23 = arith.subf %6, %7 : vector<8x128xf32>
      %cst = arith.constant 0.000000e+00 : f32
      %24 = vector.broadcast %cst : f32 to vector<8x128xf32>
      %25 = arith.select %22, %23, %24 : vector<8x128xi1>, vector<8x128xf32>
      %26 = arith.mulf %25, %25 : vector<8x128xf32>
      %c0_9 = arith.constant 0 : index
      %c0_10 = arith.constant 0 : index
      %c0_11 = arith.constant 0 : index
      %c0_12 = arith.constant 0 : index
      %27 = vector.load %arg7[%c0_9, %c0_10, %c0_11, %c0_12] : memref<1x1x8x128xf32, #tpu.memory_space<vmem>>, vector<1x1x8x128xf32>
      %28 = vector.shape_cast %27 : vector<1x1x8x128xf32> to vector<8x128xf32>
      %29 = arith.addf %28, %26 : vector<8x128xf32>
      %c0_13 = arith.constant 0 : index
      %c0_14 = arith.constant 0 : index
      %c0_15 = arith.constant 0 : index
      %c0_16 = arith.constant 0 : index
      %30 = vector.load %arg7[%c0_13, %c0_14, %c0_15, %c0_16] : memref<1x1x8x128xf32, #tpu.memory_space<vmem>>, vector<1x1x8x128xf32>
      %31 = vector.shape_cast %30 : vector<1x1x8x128xf32> to vector<8x128xf32>
      %32 = vector.shape_cast %29 : vector<8x128xf32> to vector<1x1x8x128xf32>
      tpu.vector_store %arg7[%c0_13, %c0_14, %c0_15, %c0_16], %32 {strides = array<i32>} : memref<1x1x8x128xf32, #tpu.memory_space<vmem>>, vector<1x1x8x128xf32>,
    } else {
    }
    return
  }
  func.func @transform_0(%arg0: i32, %arg1: i32, %arg2: i32, %arg3: memref<1xi32, #tpu.memory_space<smem>>) -> (i32, i32) {
    %c0_i32 = arith.constant 0 : i32
    %c0_i32_0 = arith.constant 0 : i32
    return %arg0, %c0_i32 : i32, i32
  }
  func.func @transform_1(%arg0: i32, %arg1: i32, %arg2: i32, %arg3: memref<1xi32, #tpu.memory_space<smem>>) -> (i32, i32) {
    %c1_i32 = arith.constant 1 : i32
    %0 = arith.muli %arg1, %c1_i32 : i32
    %1 = arith.addi %0, %arg2 : i32
    %c0_i32 = arith.constant 0 : i32
    return %arg0, %1 : i32, i32
  }
  func.func @transform_2(%arg0: i32, %arg1: i32, %arg2: i32, %arg3: memref<1xi32, #tpu.memory_space<smem>>) -> (i32, i32) {
    %c1_i32 = arith.constant 1 : i32
    %0 = arith.muli %arg1, %c1_i32 : i32
    %1 = arith.addi %0, %arg2 : i32
    %c0_i32 = arith.constant 0 : i32
    return %arg0, %1 : i32, i32
  }
  func.func @transform_3(%arg0: i32, %arg1: i32, %arg2: i32, %arg3: memref<1xi32, #tpu.memory_space<smem>>) -> (i32, i32, i32, i32) {
    %c0_i32 = arith.constant 0 : i32
    %c0_i32_0 = arith.constant 0 : i32
    %c0_i32_1 = arith.constant 0 : i32
    return %arg0, %arg1, %c0_i32, %c0_i32_0 : i32, i32, i32, i32
  }
}

</mosaic_0001>

<llo_original>
// kernel: hypa_assessment.1
$region0: #{hypa_assessment.1}
  #allocation0 [shape = 'u32[]', space=smem, size = 0x4, offset = 0x4, fixed_abs, tag = 'smem constant byte address 0x4 - core index']
  #allocation1 [shape = 'u32[72,128]{1,0:T(1,128)}', space=vmem, size = 0x9000, scoped, tag = 'internal scratch']
  #allocation2 [shape = 's32[1]{0}', space=sflag, size = 0x4, scoped, tag = 'scoped memory for hypa_assessment.1']
  #allocation3 [shape = 's32[1]{0:T(128)S(6)}', space=smem, size = 0x200, scoped, tag = 'prefetched SMEM operand 0']
  %s0 = inlined_call_operand.<no memory space> [shape: s32[1], index: 0, kind: input, shape index: {}]
  %s1 = inlined_call_operand.vmem [shape: s32[8,1], index: 1, kind: input, shape index: {}]
  %s2 = inlined_call_operand.vmem [shape: f32[8,128], index: 2, kind: input, shape index: {}]
  %s3 = inlined_call_operand.vmem [shape: f32[8,128], index: 3, kind: input, shape index: {}]
  %s4 = inlined_call_operand.vmem [shape: f32[1,1,8,128], index: 4, kind: output, shape index: {}]
  %s5 = sld [smem:[#allocation0]]
  $region34: #{hypa_assessment.1} parent=0
    _
  %s7 = ssub.s32 1, %s5
  %s8 = scalar_select 0, %s7, %s5
  %9 = sst [smem:[#allocation3]] %s0
  // Predicated region
  $region2: #{hypa_assessment.1} parent=0 // pred_check
    _
  $region3: #{hypa_assessment.1} parent=0 // pred_check_branch
    %11 = sbr.rel (0) target = $region5
  $region4: #{hypa_assessment.1} parent=0 // pred_region
    _
  $region5: #{hypa_assessment.1} parent=0 // pred_fallthru
    _
  // Predicated region
  $region6: #{hypa_assessment.1} parent=0 // pred_check
    _
  $region7: #{hypa_assessment.1} parent=0 // pred_check_branch
    %13 = sbr.rel (0) target = $region9
  $region8: #{hypa_assessment.1} parent=0 // pred_region
    %s14 = sadd.s32 0, 0
    %p15 = scmp.lt.s32.totalorder %s14, 0
    %s16 = scalar_select %p15, %s14, 0
    %s17 = smul.addr %s16, 8
    %s18 = scalar_lea.vmem %s2, %s17
    %s19 = sadd.s32 0, 0
  $region9: #{hypa_assessment.1} parent=0 // pred_fallthru
    _
  // Predicated region
  $region10: #{hypa_assessment.1} parent=0 // pred_check
    _
  $region11: #{hypa_assessment.1} parent=0 // pred_check_branch
    %21 = sbr.rel (0) target = $region13
  $region12: #{hypa_assessment.1} parent=0 // pred_region
    %s22 = sadd.s32 0, 0
    %p23 = scmp.lt.s32.totalorder %s22, 0
    %s24 = scalar_select %p23, %s22, 0
    %s25 = smul.addr %s24, 8
    %s26 = scalar_lea.vmem %s3, %s25
    %s27 = sadd.s32 0, 0
  $region13: #{hypa_assessment.1} parent=0 // pred_fallthru
    _
  %s28 = sadd.s32 0, 0
  %p29 = scmp.lt.s32.totalorder %s28, 0
  %s30 = scalar_select %p29, %s28, 0
  %s31 = smul.addr %s30, 8
  %s32 = scalar_lea.vmem %s2, %s31
  %s33 = sadd.s32 0, 0
  %p34 = scmp.lt.s32.totalorder %s33, 0
  %s35 = scalar_select %p34, %s33, 0
  %s36 = smul.addr %s35, 8
  %s37 = scalar_lea.vmem %s3, %s36
  %s38 = sadd.s32 0, 0
  %p39 = scmp.lt.s32.totalorder %s38, 0
  %s40 = scalar_select %p39, %s38, 0
  %s41 = smul.addr %s40, 8
  %s42 = scalar_lea.vmem %s2, %s41
  %s43 = sadd.s32 0, 0
  %s44 = sadd.s32 0, 0
  %p45 = scmp.lt.s32.totalorder %s44, 0
  %s46 = scalar_select %p45, %s44, 0
  %s47 = smul.addr %s46, 8
  %s48 = scalar_lea.vmem %s3, %s47
  %s49 = sadd.s32 0, 0
  %s50 = sadd.s32 0, 0
  %s51 = smul.u32 %s50, 128
  %p52 = scmp.eq.s32.totalorder 0, 0
  // Predicated region
  $region14: #{hypa_assessment.1} parent=0 // pred_check
    %p53 = pneg %p52
  $region15: #{hypa_assessment.1} parent=0 // pred_check_branch
    %55 = sbr.rel (%p53) target = $region17
  $region16: #{hypa_assessment.1} parent=0 // pred_region
    %56 = vst [vmem:[%s4] sm:$0xff] 0.0
  $region17: #{hypa_assessment.1} parent=0 // pred_fallthru
    _
  %v57 = vld [vmem:[%s42] sm:$0xff]
  %v58 = vld [vmem:[%s48] sm:$0xff]
  %s59 = sadd.s32 %s51, 128
  %s60 = sld [smem:[#allocation3]]
  %p61 = scmp.le.s32.totalorder %s59, %s60
  // Predicated region
  $region18: #{hypa_assessment.1} parent=0 // pred_check
    %p62 = pneg %p61
  $region19: #{hypa_assessment.1} parent=0 // pred_check_branch
    %64 = sbr.rel (%p62) target = $region21
  $region20: #{hypa_assessment.1} parent=0 // pred_region
    %v65 = vsub.f32 %v57, %v58
    %v66 = vmul.f32 %v65, %v65
    %v67 = vld [vmem:[%s4] sm:$0xff]
    %v68 = vadd.f32 %v67, %v66
    %69 = vst [vmem:[%s4] sm:$0xff] %v68
  $region21: #{hypa_assessment.1} parent=0 // pred_fallthru
    _
  %p70 = scmp.gt.s32.totalorder %s59, %s60
  // Predicated region
  $region22: #{hypa_assessment.1} parent=0 // pred_check
    %p71 = pneg %p70
  $region23: #{hypa_assessment.1} parent=0 // pred_check_branch
    %73 = sbr.rel (%p71) target = $region25
  $region24: #{hypa_assessment.1} parent=0 // pred_region
    %v74 = vld [vmem:[%s1] sm:$0xff]
    %v75 = vlaneseq
    %v76 = vand.u32 %v75, 127
    %v77 = vstv %s51
    %v78 = vsub.s32 %v74, %v77
    %79 = vset.pattern.permute.xlu0 0
    %80 = vperm.xlu0 %79, %v78
    %v81 = vpop.permute.xlu0 %80
    %vm82 = vcmp.lt.s32.totalorder %v76, %v81
    %v83 = vsub.f32 %v57, %v58
    %v84 = vsel %vm82, %v83, 0.0
    %v85 = vmul.f32 %v84, %v84
    %v86 = vld [vmem:[%s4] sm:$0xff]
    %v87 = vadd.f32 %v86, %v85
    %88 = vst [vmem:[%s4] sm:$0xff] %v87
  $region25: #{hypa_assessment.1} parent=0 // pred_fallthru
    _
  // Predicated region
  $region26: #{hypa_assessment.1} parent=0 // pred_check
    _
  $region27: #{hypa_assessment.1} parent=0 // pred_check_branch
    %90 = sbr.rel (0) target = $region29
  $region28: #{hypa_assessment.1} parent=0 // pred_region
    _
  $region29: #{hypa_assessment.1} parent=0 // pred_fallthru
    _
  // Predicated region
  $region30: #{hypa_assessment.1} parent=0 // pred_check
    _
  $region31: #{hypa_assessment.1} parent=0 // pred_check_branch
    %92 = sbr.rel (0) target = $region33
  $region32: #{hypa_assessment.1} parent=0 // pred_region
    _
  $region33: #{hypa_assessment.1} parent=0 // pred_fallthru
    _

</llo_original>
